<compile_context>
chip_gen: v7x
topology: tpu7x:2x2x1
jax: 0.10.0
libtpu: 0.0.40
codegen_flags: <defaults>
</compile_context>

<pallas_src>
import functools

import jax
import jax.numpy as jnp
from jax.experimental import pallas as pl
from jax.experimental.pallas import tpu as pltpu

LN_EPS = 1e-5          # PyTorch nn.LayerNorm default
LEAKY_SLOPE = 0.01     # PyTorch nn.LeakyReLU default
LANE = 128
SUBLANE = 8


def _round_up(x, m):
    return (x + m - 1) // m * m


def _pad2(a, rows, cols):
    return jnp.pad(a, ((0, rows - a.shape[0]), (0, cols - a.shape[1])))


def _leaky_relu(x):
    return jnp.where(x >= 0, x, LEAKY_SLOPE * x)


def _layernorm_padded(x, gamma, beta, d_real):
    # One-pass mean/variance over the *real* feature count.  Padded lanes of x
    # are exactly zero so they contribute nothing to the sums; gamma/beta are
    # zero in the padded lanes so the output stays zero there too.
    inv_d = 1.0 / d_real
    s1 = jnp.sum(x, axis=-1, keepdims=True) * inv_d          # mean
    s2 = jnp.sum(x * x, axis=-1, keepdims=True) * inv_d      # E[x^2]
    var = s2 - s1 * s1                                       # biased var (PyTorch LN)
    scale = jax.lax.rsqrt(var + LN_EPS) * gamma              # fold gamma into scale
    return (x - s1) * scale + beta


def actor_kernel(x_ref,
                 w1_ref, v1_ref,      # v1 rows: [b1; gamma1; beta1]
                 w2_ref, v2_ref,      # v2 rows: [b2; gamma2; beta2]
                 w3_ref, b3_ref,
                 out_ref, *, d1, d2):
    x = x_ref[...]

    # Layer 1: Linear(i, 2n) + LayerNorm + LeakyReLU
    h = jnp.dot(x, w1_ref[...], preferred_element_type=jnp.float32) + v1_ref[0:1, :]
    h = _leaky_relu(_layernorm_padded(h, v1_ref[1:2, :], v1_ref[2:3, :], d1))

    # Layer 2: Linear(2n, n) + LayerNorm + LeakyReLU
    h = jnp.dot(h, w2_ref[...], preferred_element_type=jnp.float32) + v2_ref[0:1, :]
    h = _leaky_relu(_layernorm_padded(h, v2_ref[1:2, :], v2_ref[2:3, :], d2))

    # Layer 3: Linear(n, o) + Sigmoid (tanh form -> EUP slot, no VALU divide)
    y = jnp.dot(h, w3_ref[...], preferred_element_type=jnp.float32) + b3_ref[...]
    out_ref[...] = (0.5 * jnp.tanh(0.5 * y) + 0.5).astype(out_ref.dtype)


def prepare_actor_params(params):
    """Pad to lane-dense layout and pack per-feature vectors.  Done ONCE."""
    f32 = jnp.float32
    i, h1 = params["w1"].shape
    _, h2 = params["w2"].shape
    _, o = params["w3"].shape
    ip, h1p, h2p, op = (_round_up(d, LANE) for d in (i, h1, h2, o))

    v1 = jnp.concatenate([params["b1"], params["g1"], params["be1"]], axis=0)
    v2 = jnp.concatenate([params["b2"], params["g2"], params["be2"]], axis=0)

    return {
        "w1": _pad2(params["w1"].astype(f32), ip, h1p),
        "v1": _pad2(v1.astype(f32), 3, h1p),
        "w2": _pad2(params["w2"].astype(f32), h1p, h2p),
        "v2": _pad2(v2.astype(f32), 3, h2p),
        "w3": _pad2(params["w3"].astype(f32), h2p, op),
        "b3": _pad2(params["b3"].astype(f32), 1, op),
    }


@functools.partial(jax.jit, static_argnames=("d1", "d2", "o", "block_b"))
def actor_forward(state, padded, *, d1, d2, o, block_b=256):
    """state: [B, i] (or [i]) float32.  padded: output of prepare_actor_params.
    d1 = 2n, d2 = n, o = action dim (real, unpadded sizes)."""
    squeeze = state.ndim == 1
    if squeeze:
        state = state[None, :]
    B, _ = state.shape
    f32 = jnp.float32

    ip, h1p = padded["w1"].shape
    _, h2p = padded["w2"].shape
    _, op = padded["w3"].shape

    # Batch tile: sublane multiple, capped by block_b; pad batch to whole tiles.
    bb = _round_up(min(block_b, _round_up(B, SUBLANE)), SUBLANE)
    bp = _round_up(B, bb)
    grid = (bp // bb,)

    x_p = _pad2(state.astype(f32), bp, ip)

    row = lambda b: (b, 0)     # batch-tiled activations
    const = lambda b: (0, 0)   # params: same block every step -> VMEM-resident

    in_specs = [
        pl.BlockSpec((bb, ip), row),
        pl.BlockSpec((ip, h1p), const), pl.BlockSpec((3, h1p), const),
        pl.BlockSpec((h1p, h2p), const), pl.BlockSpec((3, h2p), const),
        pl.BlockSpec((h2p, op), const), pl.BlockSpec((1, op), const),
    ]
    out_specs = pl.BlockSpec((bb, op), row)

    flops = 2 * B * (ip * h1p + h1p * h2p + h2p * op)
    transcendentals = B * (op + 2)           # tanh-sigmoid row + 2 rsqrt per row
    bytes_accessed = 4 * (bp * ip + bp * op
                          + ip * h1p + h1p * h2p + h2p * op
                          + 3 * h1p + 3 * h2p + op)

    kernel = functools.partial(actor_kernel, d1=float(d1), d2=float(d2))

    out_p = pl.pallas_call(
        kernel,
        out_shape=jax.ShapeDtypeStruct((bp, op), f32),
        grid=grid,
        in_specs=in_specs,
        out_specs=out_specs,
        compiler_params=pltpu.CompilerParams(
            dimension_semantics=("parallel",)),
        cost_estimate=pl.CostEstimate(
            flops=flops,
            transcendentals=transcendentals,
            bytes_accessed=bytes_accessed),
    )(x_p, padded["w1"], padded["v1"], padded["w2"], padded["v2"],
      padded["w3"], padded["b3"])

    out = out_p[:B, :o]
    return out[0] if squeeze else out


def init_actor_params(key, i, n, o):
    """Deterministic synthetic init mirroring the module's parameter shapes."""
    k1, k2, k3, k4, k5, k6 = jax.random.split(key, 6)

    def linear(kw, kb, fan_in, fan_out):
        bound = 1.0 / jnp.sqrt(jnp.float32(fan_in))
        w = jax.random.uniform(kw, (fan_in, fan_out), jnp.float32, -bound, bound)
        b = jax.random.uniform(kb, (1, fan_out), jnp.float32, -bound, bound)
        return w, b

    w1, b1 = linear(k1, k2, i, 2 * n)
    w2, b2 = linear(k3, k4, 2 * n, n)
    w3, b3 = linear(k5, k6, n, o)
    return {
        "w1": w1, "b1": b1,
        "g1": jnp.ones((1, 2 * n), jnp.float32), "be1": jnp.zeros((1, 2 * n), jnp.float32),
        "w2": w2, "b2": b2,
        "g2": jnp.ones((1, n), jnp.float32), "be2": jnp.zeros((1, n), jnp.float32),
        "w3": w3, "b3": b3,
    }


def actor_forward_ref(state, p):
    """Pure-JAX reference matching PyTorch semantics (two-pass LN, exp sigmoid)."""
    def ln(x, gamma, beta):
        mu = jnp.mean(x, axis=-1, keepdims=True)
        var = jnp.mean((x - mu) ** 2, axis=-1, keepdims=True)
        return (x - mu) * jax.lax.rsqrt(var + LN_EPS) * gamma + beta

    h1 = state @ p["w1"] + p["b1"]
    h1 = _leaky_relu(ln(h1, p["g1"], p["be1"]))
    h2 = h1 @ p["w2"] + p["b2"]
    h2 = _leaky_relu(ln(h2, p["g2"], p["be2"]))
    y = h2 @ p["w3"] + p["b3"]
    return jax.nn.sigmoid(y)


if __name__ == "__main__":
    # Small shapes consistent with the module: state dim i=5, hidden n=32, action dim o=1.
    i, n, o = 5, 32, 1
    batch = 64

    key = jax.random.PRNGKey(0)
    k_state, k_params = jax.random.split(key)
    state = jax.random.normal(k_state, (batch, i), jnp.float32)
    params = init_actor_params(k_params, i, n, o)

    padded = prepare_actor_params(params)   # one-time pad/pack, outside the hot path

    # block_b=16 -> 4 grid steps at batch=64, exercising the batch pipeline;
    # production batches use the default 256-row tiles.
    out = actor_forward(state, padded, d1=2 * n, d2=n, o=o, block_b=16)
    out = jax.block_until_ready(out)

    ref = actor_forward_ref(state, params)
    assert out.shape == (batch, o)
    assert jnp.allclose(out, ref, atol=1e-4, rtol=1e-4), "mismatch vs reference"

    print("KERNEL_OK")
</pallas_src>

<mosaic_0001>
module attributes {stable_mosaic.version = 11 : i64} {
  func.func @actor_kernel(%arg0: i32, %arg1: memref<16x128xf32, #tpu.memory_space<vmem>>, %arg2: memref<128x128xf32, #tpu.memory_space<vmem>>, %arg3: memref<3x128xf32, #tpu.memory_space<vmem>>, %arg4: memref<128x128xf32, #tpu.memory_space<vmem>>, %arg5: memref<3x128xf32, #tpu.memory_space<vmem>>, %arg6: memref<128x128xf32, #tpu.memory_space<vmem>>, %arg7: memref<1x128xf32, #tpu.memory_space<vmem>>, %arg8: memref<16x128xf32, #tpu.memory_space<vmem>>) attributes {dimension_semantics = [#tpu.dimension_semantics<parallel>], iteration_bounds = array<i64: 4>, scalar_prefetch = 0 : i64, scratch_operands = 0 : i64, tpu.core_type = #tpu.core_type<tc>, window_params = [{transform_indices = @transform_0, window_bounds = array<i64: 16, 128>}, {pipeline_mode = #tpu.pipeline_mode<synchronous>, transform_indices = @transform_1, window_bounds = array<i64: 128, 128>}, {pipeline_mode = #tpu.pipeline_mode<synchronous>, transform_indices = @transform_2, window_bounds = array<i64: 3, 128>}, {pipeline_mode = #tpu.pipeline_mode<synchronous>, transform_indices = @transform_3, window_bounds = array<i64: 128, 128>}, {pipeline_mode = #tpu.pipeline_mode<synchronous>, transform_indices = @transform_4, window_bounds = array<i64: 3, 128>}, {pipeline_mode = #tpu.pipeline_mode<synchronous>, transform_indices = @transform_5, window_bounds = array<i64: 128, 128>}, {pipeline_mode = #tpu.pipeline_mode<synchronous>, transform_indices = @transform_6, window_bounds = array<i64: 1, 128>}, {transform_indices = @transform_7, window_bounds = array<i64: 16, 128>}]} {
    %c0 = arith.constant 0 : index
    %c0_0 = arith.constant 0 : index
    %0 = vector.load %arg1[%c0, %c0_0] : memref<16x128xf32, #tpu.memory_space<vmem>>, vector<16x128xf32>
    %c0_1 = arith.constant 0 : index
    %c0_2 = arith.constant 0 : index
    %1 = vector.load %arg2[%c0_1, %c0_2] : memref<128x128xf32, #tpu.memory_space<vmem>>, vector<128x128xf32>
    %cst = arith.constant dense<0.000000e+00> : vector<16x128xf32>
    %2 = tpu.matmul %0, %1, %cst {dimension_numbers = #tpu.dot_dimension_numbers<[1], [0], [0], [1], [0, 0, 1, 1], [], []>} : vector<16x128xf32>, vector<128x128xf32>, vector<16x128xf32> -> vector<16x128xf32>
    %c0_3 = arith.constant 0 : index
    %c0_4 = arith.constant 0 : index
    %3 = vector.load %arg3[%c0_3, %c0_4] : memref<3x128xf32, #tpu.memory_space<vmem>>, vector<1x128xf32>
    %4 = vector.broadcast %3 : vector<1x128xf32> to vector<16x128xf32>
    %5 = arith.addf %2, %4 : vector<16x128xf32>
    %c1 = arith.constant 1 : index
    %c0_5 = arith.constant 0 : index
    %6 = vector.load %arg3[%c1, %c0_5] : memref<3x128xf32, #tpu.memory_space<vmem>>, vector<1x128xf32>
    %c2 = arith.constant 2 : index
    %c0_6 = arith.constant 0 : index
    %7 = vector.load %arg3[%c2, %c0_6] : memref<3x128xf32, #tpu.memory_space<vmem>>, vector<1x128xf32>
    %cst_7 = arith.constant dense<0.000000e+00> : vector<16xf32>
    %8 = vector.multi_reduction <add>, %5, %cst_7 [1] : vector<16x128xf32> to vector<16xf32>
    %9 = vector.shape_cast %8 : vector<16xf32> to vector<16x1xf32>
    %cst_8 = arith.constant 1.562500e-02 : f32
    %10 = vector.broadcast %cst_8 : f32 to vector<16x1xf32>
    %11 = arith.mulf %9, %10 : vector<16x1xf32>
    %12 = arith.mulf %5, %5 : vector<16x128xf32>
    %cst_9 = arith.constant dense<0.000000e+00> : vector<16xf32>
    %13 = vector.multi_reduction <add>, %12, %cst_9 [1] : vector<16x128xf32> to vector<16xf32>
    %14 = vector.shape_cast %13 : vector<16xf32> to vector<16x1xf32>
    %cst_10 = arith.constant 1.562500e-02 : f32
    %15 = vector.broadcast %cst_10 : f32 to vector<16x1xf32>
    %16 = arith.mulf %14, %15 : vector<16x1xf32>
    %17 = arith.mulf %11, %11 : vector<16x1xf32>
    %18 = arith.subf %16, %17 : vector<16x1xf32>
    %cst_11 = arith.constant 9.99999974E-6 : f32
    %19 = vector.broadcast %cst_11 : f32 to vector<16x1xf32>
    %20 = arith.addf %18, %19 : vector<16x1xf32>
    %21 = math.rsqrt %20 : vector<16x1xf32>
    %22 = vector.broadcast %21 : vector<16x1xf32> to vector<16x128xf32>
    %23 = vector.broadcast %6 : vector<1x128xf32> to vector<16x128xf32>
    %24 = arith.mulf %22, %23 : vector<16x128xf32>
    %25 = vector.broadcast %11 : vector<16x1xf32> to vector<16x128xf32>
    %26 = arith.subf %5, %25 : vector<16x128xf32>
    %27 = arith.mulf %26, %24 : vector<16x128xf32>
    %28 = vector.broadcast %7 : vector<1x128xf32> to vector<16x128xf32>
    %29 = arith.addf %27, %28 : vector<16x128xf32>
    %cst_12 = arith.constant 0.000000e+00 : f32
    %30 = vector.broadcast %cst_12 : f32 to vector<16x128xf32>
    %31 = arith.cmpf oge, %29, %30 : vector<16x128xf32>
    %cst_13 = arith.constant 0.00999999977 : f32
    %32 = vector.broadcast %cst_13 : f32 to vector<16x128xf32>
    %33 = arith.mulf %32, %29 : vector<16x128xf32>
    %34 = arith.select %31, %29, %33 : vector<16x128xi1>, vector<16x128xf32>
    %c0_14 = arith.constant 0 : index
    %c0_15 = arith.constant 0 : index
    %35 = vector.load %arg4[%c0_14, %c0_15] : memref<128x128xf32, #tpu.memory_space<vmem>>, vector<128x128xf32>
    %cst_16 = arith.constant dense<0.000000e+00> : vector<16x128xf32>
    %36 = tpu.matmul %34, %35, %cst_16 {dimension_numbers = #tpu.dot_dimension_numbers<[1], [0], [0], [1], [0, 0, 1, 1], [], []>} : vector<16x128xf32>, vector<128x128xf32>, vector<16x128xf32> -> vector<16x128xf32>
    %c0_17 = arith.constant 0 : index
    %c0_18 = arith.constant 0 : index
    %37 = vector.load %arg5[%c0_17, %c0_18] : memref<3x128xf32, #tpu.memory_space<vmem>>, vector<1x128xf32>
    %38 = vector.broadcast %37 : vector<1x128xf32> to vector<16x128xf32>
    %39 = arith.addf %36, %38 : vector<16x128xf32>
    %c1_19 = arith.constant 1 : index
    %c0_20 = arith.constant 0 : index
    %40 = vector.load %arg5[%c1_19, %c0_20] : memref<3x128xf32, #tpu.memory_space<vmem>>, vector<1x128xf32>
    %c2_21 = arith.constant 2 : index
    %c0_22 = arith.constant 0 : index
    %41 = vector.load %arg5[%c2_21, %c0_22] : memref<3x128xf32, #tpu.memory_space<vmem>>, vector<1x128xf32>
    %cst_23 = arith.constant dense<0.000000e+00> : vector<16xf32>
    %42 = vector.multi_reduction <add>, %39, %cst_23 [1] : vector<16x128xf32> to vector<16xf32>
    %43 = vector.shape_cast %42 : vector<16xf32> to vector<16x1xf32>
    %cst_24 = arith.constant 3.125000e-02 : f32
    %44 = vector.broadcast %cst_24 : f32 to vector<16x1xf32>
    %45 = arith.mulf %43, %44 : vector<16x1xf32>
    %46 = arith.mulf %39, %39 : vector<16x128xf32>
    %cst_25 = arith.constant dense<0.000000e+00> : vector<16xf32>
    %47 = vector.multi_reduction <add>, %46, %cst_25 [1] : vector<16x128xf32> to vector<16xf32>
    %48 = vector.shape_cast %47 : vector<16xf32> to vector<16x1xf32>
    %cst_26 = arith.constant 3.125000e-02 : f32
    %49 = vector.broadcast %cst_26 : f32 to vector<16x1xf32>
    %50 = arith.mulf %48, %49 : vector<16x1xf32>
    %51 = arith.mulf %45, %45 : vector<16x1xf32>
    %52 = arith.subf %50, %51 : vector<16x1xf32>
    %cst_27 = arith.constant 9.99999974E-6 : f32
    %53 = vector.broadcast %cst_27 : f32 to vector<16x1xf32>
    %54 = arith.addf %52, %53 : vector<16x1xf32>
    %55 = math.rsqrt %54 : vector<16x1xf32>
    %56 = vector.broadcast %55 : vector<16x1xf32> to vector<16x128xf32>
    %57 = vector.broadcast %40 : vector<1x128xf32> to vector<16x128xf32>
    %58 = arith.mulf %56, %57 : vector<16x128xf32>
    %59 = vector.broadcast %45 : vector<16x1xf32> to vector<16x128xf32>
    %60 = arith.subf %39, %59 : vector<16x128xf32>
    %61 = arith.mulf %60, %58 : vector<16x128xf32>
    %62 = vector.broadcast %41 : vector<1x128xf32> to vector<16x128xf32>
    %63 = arith.addf %61, %62 : vector<16x128xf32>
    %cst_28 = arith.constant 0.000000e+00 : f32
    %64 = vector.broadcast %cst_28 : f32 to vector<16x128xf32>
    %65 = arith.cmpf oge, %63, %64 : vector<16x128xf32>
    %cst_29 = arith.constant 0.00999999977 : f32
    %66 = vector.broadcast %cst_29 : f32 to vector<16x128xf32>
    %67 = arith.mulf %66, %63 : vector<16x128xf32>
    %68 = arith.select %65, %63, %67 : vector<16x128xi1>, vector<16x128xf32>
    %c0_30 = arith.constant 0 : index
    %c0_31 = arith.constant 0 : index
    %69 = vector.load %arg6[%c0_30, %c0_31] : memref<128x128xf32, #tpu.memory_space<vmem>>, vector<128x128xf32>
    %cst_32 = arith.constant dense<0.000000e+00> : vector<16x128xf32>
    %70 = tpu.matmul %68, %69, %cst_32 {dimension_numbers = #tpu.dot_dimension_numbers<[1], [0], [0], [1], [0, 0, 1, 1], [], []>} : vector<16x128xf32>, vector<128x128xf32>, vector<16x128xf32> -> vector<16x128xf32>
    %c0_33 = arith.constant 0 : index
    %c0_34 = arith.constant 0 : index
    %71 = vector.load %arg7[%c0_33, %c0_34] : memref<1x128xf32, #tpu.memory_space<vmem>>, vector<1x128xf32>
    %72 = vector.broadcast %71 : vector<1x128xf32> to vector<16x128xf32>
    %73 = arith.addf %70, %72 : vector<16x128xf32>
    %cst_35 = arith.constant 5.000000e-01 : f32
    %74 = vector.broadcast %cst_35 : f32 to vector<16x128xf32>
    %75 = arith.mulf %74, %73 : vector<16x128xf32>
    %76 = math.tanh %75 : vector<16x128xf32>
    %cst_36 = arith.constant 5.000000e-01 : f32
    %77 = vector.broadcast %cst_36 : f32 to vector<16x128xf32>
    %78 = arith.mulf %77, %76 : vector<16x128xf32>
    %cst_37 = arith.constant 5.000000e-01 : f32
    %79 = vector.broadcast %cst_37 : f32 to vector<16x128xf32>
    %80 = arith.addf %78, %79 : vector<16x128xf32>
    %c0_38 = arith.constant 0 : index
    %c0_39 = arith.constant 0 : index
    %81 = vector.load %arg8[%c0_38, %c0_39] : memref<16x128xf32, #tpu.memory_space<vmem>>, vector<16x128xf32>
    tpu.vector_store %arg8[%c0_38, %c0_39], %80 {strides = array<i32>} : memref<16x128xf32, #tpu.memory_space<vmem>>, vector<16x128xf32>,
    return
  }
  func.func @transform_0(%arg0: i32) -> (i32, i32) {
    %c0_i32 = arith.constant 0 : i32
    %c0_i32_0 = arith.constant 0 : i32
    return %arg0, %c0_i32 : i32, i32
  }
  func.func @transform_1(%arg0: i32) -> (i32, i32) {
    %c0_i32 = arith.constant 0 : i32
    %c0_i32_0 = arith.constant 0 : i32
    %c0_i32_1 = arith.constant 0 : i32
    return %c0_i32, %c0_i32_0 : i32, i32
  }
  func.func @transform_2(%arg0: i32) -> (i32, i32) {
    %c0_i32 = arith.constant 0 : i32
    %c0_i32_0 = arith.constant 0 : i32
    %c0_i32_1 = arith.constant 0 : i32
    return %c0_i32, %c0_i32_0 : i32, i32
  }
  func.func @transform_3(%arg0: i32) -> (i32, i32) {
    %c0_i32 = arith.constant 0 : i32
    %c0_i32_0 = arith.constant 0 : i32
    %c0_i32_1 = arith.constant 0 : i32
    return %c0_i32, %c0_i32_0 : i32, i32
  }
  func.func @transform_4(%arg0: i32) -> (i32, i32) {
    %c0_i32 = arith.constant 0 : i32
    %c0_i32_0 = arith.constant 0 : i32
    %c0_i32_1 = arith.constant 0 : i32
    return %c0_i32, %c0_i32_0 : i32, i32
  }
  func.func @transform_5(%arg0: i32) -> (i32, i32) {
    %c0_i32 = arith.constant 0 : i32
    %c0_i32_0 = arith.constant 0 : i32
    %c0_i32_1 = arith.constant 0 : i32
    return %c0_i32, %c0_i32_0 : i32, i32
  }
  func.func @transform_6(%arg0: i32) -> (i32, i32) {
    %c0_i32 = arith.constant 0 : i32
    %c0_i32_0 = arith.constant 0 : i32
    %c0_i32_1 = arith.constant 0 : i32
    return %c0_i32, %c0_i32_0 : i32, i32
  }
  func.func @transform_7(%arg0: i32) -> (i32, i32) {
    %c0_i32 = arith.constant 0 : i32
    %c0_i32_0 = arith.constant 0 : i32
    return %arg0, %c0_i32 : i32, i32
  }
}

</mosaic_0001>

<llo_original>
// kernel: actor_forward.1
$region0: #{actor_forward.1}
  #allocation0 [shape = 'u32[]', space=smem, size = 0x4, offset = 0x4, fixed_abs, tag = 'smem constant byte address 0x4 - core index']
  #allocation1 [shape = 'u32[144,128]{1,0:T(1,128)}', space=vmem, size = 0x12000, scoped, tag = 'internal scratch']
  %s0 = inlined_call_operand.vmem [shape: f32[64,128], index: 0, kind: input, shape index: {}]
  %s1 = inlined_call_operand.vmem [shape: f32[128,128], index: 1, kind: input, shape index: {}]
  %s2 = inlined_call_operand.vmem [shape: f32[3,128], index: 2, kind: input, shape index: {}]
  %s3 = inlined_call_operand.hbm [shape: f32[128,128], index: 3, kind: input, shape index: {}]
  %s4 = inlined_call_operand.vmem [shape: f32[3,128], index: 4, kind: input, shape index: {}]
  %s5 = inlined_call_operand.hbm [shape: f32[128,128], index: 5, kind: input, shape index: {}]
  %s6 = inlined_call_operand.vmem [shape: f32[1,128], index: 6, kind: input, shape index: {}]
  %s7 = inlined_call_operand.vmem [shape: f32[64,128], index: 7, kind: output, shape index: {}]
  %s8 = sld [smem:[#allocation0]]
  $region69: #{actor_forward.1} parent=0
    _
  %s10 = ssub.s32 1, %s8
  %s11 = scalar_select 0, %s10, %s8
  $region1: #{actor_forward.1} parent=0
    #allocation2 [shape = 'u8[65536]{0}', space=vmem, size = 0x10000, scoped, tag = 'input window, operand 3, single buffered']
    #allocation3 [shape = 's32[2]{0}', space=sflag, size = 0x8, scoped, tag = 'scoped memory for actor_forward.1']
    #allocation4 [shape = 'u8[65536]{0}', space=vmem, size = 0x10000, scoped, tag = 'input window, operand 5, single buffered']
    #allocation5 [shape = 's32[1]{0}', space=sflag, size = 0x4, scoped, tag = 'scoped memory for actor_forward.1']
    %12 = vsyncpa [#allocation3], 0
    %13 = vsyncpa [#allocation5], 0
    loop: start=0, step=1, limit=6
    $region2: #{actor_forward.1} parent=1 // loop_pre_header
      _
    $region3: #{actor_forward.1} parent=1 // loop_header
      %s15 = sphi 0, %s19
      %p16 = scmp.ge.s32.totalorder %s15, 6
      %s25 = sphi 0, %s27
      %s28 = sphi 0, %s25
      %s29 = sphi 0, %s28
      %s45 = sphi 0, %s29
      %s49 = sphi 0, %s49
      %s51 = sphi 0, %s49
      %s52 = sphi 0, %s51
      %s66 = sphi 0, %s52
      %s70 = sphi 0, %s70
      %s72 = sphi 0, %s70
      %s73 = sphi 0, %s72
      %s87 = sphi 0, %s73
      %s91 = sphi 0, %s91
      %s93 = sphi 0, %s91
      %s94 = sphi 0, %s93
      %s108 = sphi 0, %s94
      %s112 = sphi 0, %s112
      %s114 = sphi 0, %s112
      %s115 = sphi 0, %s114
      %s129 = sphi 0, %s115
      %s133 = sphi 0, %s133
      %s135 = sphi 0, %s133
      %s136 = sphi 0, %s135
      %s150 = sphi 0, %s136
      %s154 = sphi 0, %s154
      %s156 = sphi 0, %s154
      %s157 = sphi 0, %s156
      %s171 = sphi 0, %s157
      %s177 = sphi 0, %s179
      %s180 = sphi 0, %s177
      %s181 = sphi 0, %s180
      %s197 = sphi 0, %s181
    $region4: #{actor_forward.1} parent=1 // loop_header_branch
      %18 = sbr.rel (%p16) target = $region8
    $region5: #{actor_forward.1} parent=1 // loop_body
      %s20 = ssub.s32 %s15, 1
      %s21 = ssub.s32 %s15, 2
      %s22 = sadd.s32 %s15, 1
      %s23 = ssub.s32 %s15, %s22
      %p24 = scmp.eq.s32.totalorder %s23, 0
      %s26 = sadd.s32 %s25, 1
      %s27 = scalar_select %p24, %s25, %s26
      %p30 = pneg %p24
      %p31 = scmp.eq.s32.totalorder %s15, 3
      %p32 = por %p30, %p31
      %p33 = scmp.ne.s32.totalorder %s25, %s28
      %p34 = scmp.eq.s32.totalorder %s15, 0
      %p35 = por %p33, %p34
      %p36 = scmp.ne.s32.totalorder %s25, %s28
      %p37 = scmp.eq.s32.totalorder %s20, 3
      %p38 = por %p36, %p37
      %p39 = scmp.ne.s32.totalorder %s28, %s29
      %p40 = scmp.eq.s32.totalorder %s20, 0
      %p41 = por %p39, %p40
      %p42 = scmp.ne.s32.totalorder %s28, %s29
      %p43 = scmp.eq.s32.totalorder %s21, 3
      %p44 = por %p42, %p43
      %p46 = scmp.ne.s32.totalorder %s29, %s45
      %p47 = scmp.eq.s32.totalorder %s21, 0
      %p48 = por %p46, %p47
      %s50 = sadd.s32 %s49, 1
      %p53 = scmp.eq.s32.totalorder %s15, 3
      %p54 = scmp.ne.s32.totalorder %s49, %s51
      %p55 = scmp.eq.s32.totalorder %s15, 0
      %p56 = por %p54, %p55
      %p57 = scmp.ne.s32.totalorder %s49, %s51
      %p58 = scmp.eq.s32.totalorder %s20, 3
      %p59 = por %p57, %p58
      %p60 = scmp.ne.s32.totalorder %s51, %s52
      %p61 = scmp.eq.s32.totalorder %s20, 0
      %p62 = por %p60, %p61
      %p63 = scmp.ne.s32.totalorder %s51, %s52
      %p64 = scmp.eq.s32.totalorder %s21, 3
      %p65 = por %p63, %p64
      %p67 = scmp.ne.s32.totalorder %s52, %s66
      %p68 = scmp.eq.s32.totalorder %s21, 0
      %p69 = por %p67, %p68
      %s71 = sadd.s32 %s70, 1
      %p74 = scmp.eq.s32.totalorder %s15, 3
      %p75 = scmp.ne.s32.totalorder %s70, %s72
      %p76 = scmp.eq.s32.totalorder %s15, 0
      %p77 = por %p75, %p76
      %p78 = scmp.ne.s32.totalorder %s70, %s72
      %p79 = scmp.eq.s32.totalorder %s20, 3
      %p80 = por %p78, %p79
      %p81 = scmp.ne.s32.totalorder %s72, %s73
      %p82 = scmp.eq.s32.totalorder %s20, 0
      %p83 = por %p81, %p82
      %p84 = scmp.ne.s32.totalorder %s72, %s73
      %p85 = scmp.eq.s32.totalorder %s21, 3
      %p86 = por %p84, %p85
      %p88 = scmp.ne.s32.totalorder %s73, %s87
      %p89 = scmp.eq.s32.totalorder %s21, 0
      %p90 = por %p88, %p89
      %s92 = sadd.s32 %s91, 1
      %p95 = scmp.eq.s32.totalorder %s15, 3
      %p96 = scmp.ne.s32.totalorder %s91, %s93
      %p97 = scmp.eq.s32.totalorder %s15, 0
      %p98 = por %p96, %p97
      %p99 = scmp.ne.s32.totalorder %s91, %s93
      %p100 = scmp.eq.s32.totalorder %s20, 3
      %p101 = por %p99, %p100
      %p102 = scmp.ne.s32.totalorder %s93, %s94
      %p103 = scmp.eq.s32.totalorder %s20, 0
      %p104 = por %p102, %p103
      %p105 = scmp.ne.s32.totalorder %s93, %s94
      %p106 = scmp.eq.s32.totalorder %s21, 3
      %p107 = por %p105, %p106
      %p109 = scmp.ne.s32.totalorder %s94, %s108
      %p110 = scmp.eq.s32.totalorder %s21, 0
      %p111 = por %p109, %p110
      %s113 = sadd.s32 %s112, 1
      %p116 = scmp.eq.s32.totalorder %s15, 3
      %p117 = scmp.ne.s32.totalorder %s112, %s114
      %p118 = scmp.eq.s32.totalorder %s15, 0
      %p119 = por %p117, %p118
      %p120 = scmp.ne.s32.totalorder %s112, %s114
      %p121 = scmp.eq.s32.totalorder %s20, 3
      %p122 = por %p120, %p121
      %p123 = scmp.ne.s32.totalorder %s114, %s115
      %p124 = scmp.eq.s32.totalorder %s20, 0
      %p125 = por %p123, %p124
      %p126 = scmp.ne.s32.totalorder %s114, %s115
      %p127 = scmp.eq.s32.totalorder %s21, 3
      %p128 = por %p126, %p127
      %p130 = scmp.ne.s32.totalorder %s115, %s129
      %p131 = scmp.eq.s32.totalorder %s21, 0
      %p132 = por %p130, %p131
      %s134 = sadd.s32 %s133, 1
      %p137 = scmp.eq.s32.totalorder %s15, 3
      %p138 = scmp.ne.s32.totalorder %s133, %s135
      %p139 = scmp.eq.s32.totalorder %s15, 0
      %p140 = por %p138, %p139
      %p141 = scmp.ne.s32.totalorder %s133, %s135
      %p142 = scmp.eq.s32.totalorder %s20, 3
      %p143 = por %p141, %p142
      %p144 = scmp.ne.s32.totalorder %s135, %s136
      %p145 = scmp.eq.s32.totalorder %s20, 0
      %p146 = por %p144, %p145
      %p147 = scmp.ne.s32.totalorder %s135, %s136
      %p148 = scmp.eq.s32.totalorder %s21, 3
      %p149 = por %p147, %p148
      %p151 = scmp.ne.s32.totalorder %s136, %s150
      %p152 = scmp.eq.s32.totalorder %s21, 0
      %p153 = por %p151, %p152
      %s155 = sadd.s32 %s154, 1
      %p158 = scmp.eq.s32.totalorder %s15, 3
      %p159 = scmp.ne.s32.totalorder %s154, %s156
      %p160 = scmp.eq.s32.totalorder %s15, 0
      %p161 = por %p159, %p160
      %p162 = scmp.ne.s32.totalorder %s154, %s156
      %p163 = scmp.eq.s32.totalorder %s20, 3
      %p164 = por %p162, %p163
      %p165 = scmp.ne.s32.totalorder %s156, %s157
      %p166 = scmp.eq.s32.totalorder %s20, 0
      %p167 = por %p165, %p166
      %p168 = scmp.ne.s32.totalorder %s156, %s157
      %p169 = scmp.eq.s32.totalorder %s21, 3
      %p170 = por %p168, %p169
      %p172 = scmp.ne.s32.totalorder %s157, %s171
      %p173 = scmp.eq.s32.totalorder %s21, 0
      %p174 = por %p172, %p173
      %s175 = ssub.s32 %s15, %s22
      %p176 = scmp.eq.s32.totalorder %s175, 0
      %s178 = sadd.s32 %s177, 1
      %s179 = scalar_select %p176, %s177, %s178
      %p182 = pneg %p176
      %p183 = scmp.eq.s32.totalorder %s15, 3
      %p184 = por %p182, %p183
      %p185 = scmp.ne.s32.totalorder %s177, %s180
      %p186 = scmp.eq.s32.totalorder %s15, 0
      %p187 = por %p185, %p186
      %p188 = scmp.ne.s32.totalorder %s177, %s180
      %p189 = scmp.eq.s32.totalorder %s20, 3
      %p190 = por %p188, %p189
      %p191 = scmp.ne.s32.totalorder %s180, %s181
      %p192 = scmp.eq.s32.totalorder %s20, 0
      %p193 = por %p191, %p192
      %p194 = scmp.ne.s32.totalorder %s180, %s181
      %p195 = scmp.eq.s32.totalorder %s21, 3
      %p196 = por %p194, %p195
      %p198 = scmp.ne.s32.totalorder %s181, %s197
      %p199 = scmp.eq.s32.totalorder %s21, 0
      %p200 = por %p198, %p199
      %p201 = scmp.le.s32.totalorder 1, %s15
      %p202 = scmp.lt.s32.totalorder %s15, 5
      %p203 = pnand %p201, %p202
      %p204 = pneg %p203
      // Predicated region
      $region9: #{actor_forward.1} parent=5 // pred_check
        _
      $region10: #{actor_forward.1} parent=5 // pred_check_branch
        %206 = sbr.rel (%p203) target = $region12
      $region11: #{actor_forward.1} parent=5 // pred_region
        %s207 = ssub.s32 %s15, 1
        // Predicated region
        $region13: #{actor_forward.1} parent=11 // pred_check
          %p208 = pneg %p62
        $region14: #{actor_forward.1} parent=11 // pred_check_branch
          %210 = sbr.rel (%p208) target = $region16
        $region15: #{actor_forward.1} parent=11 // pred_region
          _
        $region16: #{actor_forward.1} parent=11 // pred_fallthru
          _
        // Predicated region
        $region17: #{actor_forward.1} parent=11 // pred_check
          %p211 = pneg %p83
        $region18: #{actor_forward.1} parent=11 // pred_check_branch
          %213 = sbr.rel (%p211) target = $region20
        $region19: #{actor_forward.1} parent=11 // pred_region
          _
        $region20: #{actor_forward.1} parent=11 // pred_fallthru
          _
        // Predicated region
        $region21: #{actor_forward.1} parent=11 // pred_check
          %p214 = pneg %p104
        $region22: #{actor_forward.1} parent=11 // pred_check_branch
          %216 = sbr.rel (%p214) target = $region24
        $region23: #{actor_forward.1} parent=11 // pred_region
          %s218 = ssub.s32 2048, 2048
          %219 = vsyncadd [#allocation3], %s218
          %s220 = sshll.u32 [#allocation2], 4
          %s221 = int_to_ptr.vmem [resolvable:$true] %s220
          %226 = dma.hbm_to_vmem [thread:$0]  %s3, 2048, %s221, [#allocation3], 128, 128, 8
        $region24: #{actor_forward.1} parent=11 // pred_fallthru
          _
        // Predicated region
        $region25: #{actor_forward.1} parent=11 // pred_check
          %p227 = pneg %p125
        $region26: #{actor_forward.1} parent=11 // pred_check_branch
          %229 = sbr.rel (%p227) target = $region28
        $region27: #{actor_forward.1} parent=11 // pred_region
          _
        $region28: #{actor_forward.1} parent=11 // pred_fallthru
          _
        // Predicated region
        $region29: #{actor_forward.1} parent=11 // pred_check
          %p230 = pneg %p146
        $region30: #{actor_forward.1} parent=11 // pred_check_branch
          %232 = sbr.rel (%p230) target = $region32
        $region31: #{actor_forward.1} parent=11 // pred_region
          %s234 = ssub.s32 2048, 2048
          %235 = vsyncadd [#allocation5], %s234
          %s236 = sshll.u32 [#allocation4], 4
          %s237 = int_to_ptr.vmem [resolvable:$true] %s236
          %242 = dma.hbm_to_vmem [thread:$0]  %s5, 2048, %s237, [#allocation5], 128, 128, 8
        $region32: #{actor_forward.1} parent=11 // pred_fallthru
          _
        // Predicated region
        $region33: #{actor_forward.1} parent=11 // pred_check
          %p243 = pneg %p167
        $region34: #{actor_forward.1} parent=11 // pred_check_branch
          %245 = sbr.rel (%p243) target = $region36
        $region35: #{actor_forward.1} parent=11 // pred_region
          _
        $region36: #{actor_forward.1} parent=11 // pred_fallthru
          _
      $region12: #{actor_forward.1} parent=5 // pred_fallthru
        _
      %p246 = scmp.lt.s32.totalorder %s15, 4
      // Predicated region
      $region37: #{actor_forward.1} parent=5 // pred_check
        %p247 = pneg %p246
      $region38: #{actor_forward.1} parent=5 // pred_check_branch
        %249 = sbr.rel (%p247) target = $region40
      $region39: #{actor_forward.1} parent=5 // pred_region
        // Predicated region
        $region41: #{actor_forward.1} parent=39 // pred_check
          %p250 = pneg %p35
        $region42: #{actor_forward.1} parent=39 // pred_check_branch
          %252 = sbr.rel (%p250) target = $region44
        $region43: #{actor_forward.1} parent=39 // pred_region
          %s253 = smul.u32 2, %s15
          %p254 = scmp.lt.s32.totalorder %s253, 7
          %s255 = scalar_select %p254, %s253, 7
          %s256 = smul.addr %s255, 8
          %s257 = scalar_lea.vmem %s0, %s256
          %s258 = smul.u32 2, %s15
        $region44: #{actor_forward.1} parent=39 // pred_fallthru
          _
      $region40: #{actor_forward.1} parent=5 // pred_fallthru
        _
      %p259 = scmp.le.s32.totalorder 1, %s15
      %p260 = scmp.lt.s32.totalorder %s15, 5
      %p261 = pnand %p259, %p260
      %p262 = pneg %p261
      // Predicated region
      $region45: #{actor_forward.1} parent=5 // pred_check
        _
      $region46: #{actor_forward.1} parent=5 // pred_check_branch
        %264 = sbr.rel (%p261) target = $region48
      $region47: #{actor_forward.1} parent=5 // pred_region
        %s265 = ssub.s32 %s15, 1
        // Predicated region
        $region49: #{actor_forward.1} parent=47 // pred_check
          %p266 = pneg %p104
        $region50: #{actor_forward.1} parent=47 // pred_check_branch
          %268 = sbr.rel (%p266) target = $region52
        $region51: #{actor_forward.1} parent=47 // pred_region
          %269 = dma.done [#allocation3], 2048
        $region52: #{actor_forward.1} parent=47 // pred_fallthru
          _
        // Predicated region
        $region53: #{actor_forward.1} parent=47 // pred_check
          %p270 = pneg %p146
        $region54: #{actor_forward.1} parent=47 // pred_check_branch
          %272 = sbr.rel (%p270) target = $region56
        $region55: #{actor_forward.1} parent=47 // pred_region
          %273 = dma.done [#allocation5], 2048
        $region56: #{actor_forward.1} parent=47 // pred_fallthru
          _
        %s274 = smul.u32 2, %s20
        %p275 = scmp.lt.s32.totalorder %s274, 7
        %s276 = scalar_select %p275, %s274, 7
        %s277 = smul.addr %s276, 8
        %s278 = scalar_lea.vmem %s0, %s277
        %p279 = pneg %p41
        %p280 = pneg %p38
        %p281 = pneg %p62
        %p282 = pneg %p59
        %p283 = pneg %p83
        %p284 = pneg %p80
        %p285 = pneg %p104
        %p286 = pneg %p101
        %p287 = pneg %p125
        %p288 = pneg %p122
        %p289 = pneg %p146
        %p290 = pneg %p143
        %p291 = pneg %p167
        %p292 = pneg %p164
        %p293 = pneg %p193
        %p294 = pneg %p190
        %s295 = smul.u32 2, %s20
        %p296 = scmp.lt.s32.totalorder %s295, 7
        %s297 = scalar_select %p296, %s295, 7
        %s298 = smul.addr %s297, 8
        %s299 = scalar_lea.vmem %s7, %s298
        %s300 = smul.u32 2, %s20
        %p301 = scmp.lt.s32.totalorder %s300, 7
        %s302 = scalar_select %p301, %s300, 7
        %s303 = smul.addr %s302, 8
        %s304 = scalar_lea.vmem %s0, %s303
        %s305 = smul.u32 2, %s20
        %s306 = smul.u32 2, %s20
        %p307 = scmp.lt.s32.totalorder %s306, 7
        %s308 = scalar_select %p307, %s306, 7
        %s309 = smul.addr %s308, 8
        %s310 = scalar_lea.vmem %s7, %s309
        %s311 = smul.u32 2, %s20
        %v312 = vld [vmem:[%s304] sm:$0xff]
        %v313 = vld [vmem:[%s304 + $0x8] sm:$0xff]
        %v314 = vld [vmem:[%s1] sm:$0xff]
        %v315 = vld [vmem:[%s1 + $0x8] sm:$0xff]
        %v316 = vld [vmem:[%s1 + $0x10] sm:$0xff]
        %v317 = vld [vmem:[%s1 + $0x18] sm:$0xff]
        %v318 = vld [vmem:[%s1 + $0x20] sm:$0xff]
        %v319 = vld [vmem:[%s1 + $0x28] sm:$0xff]
        %v320 = vld [vmem:[%s1 + $0x30] sm:$0xff]
        %v321 = vld [vmem:[%s1 + $0x38] sm:$0xff]
        %v322 = vld [vmem:[%s1 + $0x40] sm:$0xff]
        %v323 = vld [vmem:[%s1 + $0x48] sm:$0xff]
        %v324 = vld [vmem:[%s1 + $0x50] sm:$0xff]
        %v325 = vld [vmem:[%s1 + $0x58] sm:$0xff]
        %v326 = vld [vmem:[%s1 + $0x60] sm:$0xff]
        %v327 = vld [vmem:[%s1 + $0x68] sm:$0xff]
        %v328 = vld [vmem:[%s1 + $0x70] sm:$0xff]
        %v329 = vld [vmem:[%s1 + $0x78] sm:$0xff]
        %v330 = vld [vmem:[%s2] sm:$0x1]
        %v331 = vlaneseq
        %v332 = vshrl.u32 %v331, 7
        %v333 = vsub.s32 0, %v332
        %v334 = vrot.slane %v330, %v333
        %335 = vmatprep.subr.mxu0 0.0
        %336 = vmatpush1.msra.mxu0 %v314
        %337 = vmatprep.subr.mxu0 0.0
        %338 = vmatpush1.msra.mxu0 %v315
        %339 = vmatprep.subr.mxu0 0.0
        %340 = vmatpush1.msra.mxu0 %v316
        %341 = vmatprep.subr.mxu0 0.0
        %342 = vmatpush1.msra.mxu0 %v317
        %343 = vmatprep.subr.mxu0 0.0
        %344 = vmatpush1.msra.mxu0 %v318
        %345 = vmatprep.subr.mxu0 0.0
        %346 = vmatpush1.msra.mxu0 %v319
        %347 = vmatprep.subr.mxu0 0.0
        %348 = vmatpush1.msra.mxu0 %v320
        %349 = vmatprep.subr.mxu0 0.0
        %350 = vmatpush1.msra.mxu0 %v321
        %351 = vmatprep.subr.mxu0 0.0
        %352 = vmatpush1.msra.mxu0 %v322
        %353 = vmatprep.subr.mxu0 0.0
        %354 = vmatpush1.msra.mxu0 %v323
        %355 = vmatprep.subr.mxu0 0.0
        %356 = vmatpush1.msra.mxu0 %v324
        %357 = vmatprep.subr.mxu0 0.0
        %358 = vmatpush1.msra.mxu0 %v325
        %359 = vmatprep.subr.mxu0 0.0
        %360 = vmatpush1.msra.mxu0 %v326
        %361 = vmatprep.subr.mxu0 0.0
        %362 = vmatpush1.msra.mxu0 %v327
        %363 = vmatprep.subr.mxu0 0.0
        %364 = vmatpush1.msra.mxu0 %v328
        %365 = vmatprep.subr.mxu0 0.0
        %366 = vmatpush1.msra.mxu0 %v329
        %367 = vmatprep.subr.mxu0 0.0
        %368 = vmatpush1.msra.mxu0 0.0
        %369 = vmatprep.subr.mxu0 0.0
        %370 = vmatpush1.msra.mxu0 0.0
        %371 = vmatprep.subr.mxu0 0.0
        %372 = vmatpush1.msra.mxu0 0.0
        %373 = vmatprep.subr.mxu0 0.0
        %374 = vmatpush1.msra.mxu0 0.0
        %375 = vmatprep.subr.mxu0 0.0
        %376 = vmatpush1.msra.mxu0 0.0
        %377 = vmatprep.subr.mxu0 0.0
        %378 = vmatpush1.msra.mxu0 0.0
        %379 = vmatprep.subr.mxu0 0.0
        %380 = vmatpush1.msra.mxu0 0.0
        %381 = vmatprep.subr.mxu0 0.0
        %382 = vmatpush1.msra.mxu0 0.0
        %383 = vmatprep.subr.mxu0 0.0
        %384 = vmatpush1.msra.mxu0 0.0
        %385 = vmatprep.subr.mxu0 0.0
        %386 = vmatpush1.msra.mxu0 0.0
        %387 = vmatprep.subr.mxu0 0.0
        %388 = vmatpush1.msra.mxu0 0.0
        %389 = vmatprep.subr.mxu0 0.0
        %390 = vmatpush1.msra.mxu0 0.0
        %391 = vmatprep.subr.mxu0 0.0
        %392 = vmatpush1.msra.mxu0 0.0
        %393 = vmatprep.subr.mxu0 0.0
        %394 = vmatpush1.msra.mxu0 0.0
        %395 = vmatprep.subr.mxu0 0.0
        %396 = vmatpush1.msra.mxu0 0.0
        %397 = vmatprep.subr.mxu0 0.0
        %398 = vmatpush1.msra.mxu0 0.0
        %399 = vmatprep.mubr.f32.mxu0 0.0
        %400 = vmatmul.mubr.f32.gmra.mrb[0].mxu0 %v312
        %v401 = vpop.f32.mrb[0].mxu0
        %v402 = vadd.f32 %v334, %v401
        %v403 = vpop.f32.mrb[0].mxu0
        %404 = vmatprep.mubr.f32.mxu0 0.0
        %405 = vmatmul.mubr.f32.gmra.mrb[0].mxu0 %v313
        %v406 = vpop.f32.mrb[0].mxu0
        %v407 = vadd.f32 %v334, %v406
        %v408 = vpop.f32.mrb[0].mxu0
        %409 = vdwg.mxu0
        %v410 = vld [vmem:[%s2 + $0x1] sm:$0x1]
        %v411 = vld [vmem:[%s2 + $0x2] sm:$0x1]
        %412 = vadd.xlane.f32.xlu0 %v402
        %v413 = vpop.xlane.xlu0 %412
        %414 = vadd.xlane.f32.xlu0 %v407
        %v415 = vpop.xlane.xlu0 %414
        %v416 = vmul.f32 %v413, 0.015625
        %v417 = vmul.f32 %v415, 0.015625
        %v418 = vmul.f32 %v402, %v402
        %v419 = vmul.f32 %v407, %v407
        %420 = vadd.xlane.f32.xlu0 %v418
        %v421 = vpop.xlane.xlu0 %420
        %422 = vadd.xlane.f32.xlu0 %v419
        %v423 = vpop.xlane.xlu0 %422
        %v424 = vmul.f32 %v421, 0.015625
        %v425 = vmul.f32 %v423, 0.015625
        %v426 = vmul.f32 %v416, %v416
        %v427 = vmul.f32 %v417, %v417
        %v428 = vsub.f32 %v424, %v426
        %v429 = vsub.f32 %v425, %v427
        %v430 = vadd.f32 %v428, 1e-05
        %v431 = vadd.f32 %v429, 1e-05
        %v432 = vrsqrt.pop %v430
        %v433 = vrsqrt.pop %v431
        %v434 = vlaneseq
        %v435 = vshrl.u32 %v434, 7
        %v436 = vsub.s32 0, %v435
        %v437 = vrot.slane %v410, %v436
        %v438 = vmul.f32 %v432, %v437
        %v439 = vmul.f32 %v433, %v437
        %v440 = vsub.f32 %v402, %v416
        %v441 = vsub.f32 %v407, %v417
        %v442 = vmul.f32 %v440, %v438
        %v443 = vmul.f32 %v441, %v439
        %v444 = vlaneseq
        %v445 = vshrl.u32 %v444, 7
        %v446 = vsub.s32 0, %v445
        %v447 = vrot.slane %v411, %v446
        %v448 = vadd.f32 %v442, %v447
        %v449 = vadd.f32 %v443, %v447
        %vm450 = vcmp.ge.f32.partialorder %v448, 0.0
        %vm451 = vcmp.ge.f32.partialorder %v449, 0.0
        %v452 = vmul.f32 %v448, 0.01
        %v453 = vmul.f32 %v449, 0.01
        %v454 = vsel %vm450, %v448, %v452
        %v455 = vsel %vm451, %v449, %v453
        %v456 = vld [vmem:[#allocation2] sm:$0xff]
        %v457 = vld [vmem:[#allocation2 + $0x8] sm:$0xff]
        %v458 = vld [vmem:[#allocation2 + $0x10] sm:$0xff]
        %v459 = vld [vmem:[#allocation2 + $0x18] sm:$0xff]
        %v460 = vld [vmem:[#allocation2 + $0x20] sm:$0xff]
        %v461 = vld [vmem:[#allocation2 + $0x28] sm:$0xff]
        %v462 = vld [vmem:[#allocation2 + $0x30] sm:$0xff]
        %v463 = vld [vmem:[#allocation2 + $0x38] sm:$0xff]
        %v464 = vld [vmem:[#allocation2 + $0x40] sm:$0xff]
        %v465 = vld [vmem:[#allocation2 + $0x48] sm:$0xff]
        %v466 = vld [vmem:[#allocation2 + $0x50] sm:$0xff]
        %v467 = vld [vmem:[#allocation2 + $0x58] sm:$0xff]
        %v468 = vld [vmem:[#allocation2 + $0x60] sm:$0xff]
        %v469 = vld [vmem:[#allocation2 + $0x68] sm:$0xff]
        %v470 = vld [vmem:[#allocation2 + $0x70] sm:$0xff]
        %v471 = vld [vmem:[#allocation2 + $0x78] sm:$0xff]
        %v472 = vld [vmem:[%s4] sm:$0x1]
        %v473 = vlaneseq
        %v474 = vshrl.u32 %v473, 7
        %v475 = vsub.s32 0, %v474
        %v476 = vrot.slane %v472, %v475
        %477 = vmatprep.subr.mxu0 0.0
        %478 = vmatpush1.msra.mxu0 %v456
        %479 = vmatprep.subr.mxu0 0.0
        %480 = vmatpush1.msra.mxu0 %v457
        %481 = vmatprep.subr.mxu0 0.0
        %482 = vmatpush1.msra.mxu0 %v458
        %483 = vmatprep.subr.mxu0 0.0
        %484 = vmatpush1.msra.mxu0 %v459
        %485 = vmatprep.subr.mxu0 0.0
        %486 = vmatpush1.msra.mxu0 %v460
        %487 = vmatprep.subr.mxu0 0.0
        %488 = vmatpush1.msra.mxu0 %v461
        %489 = vmatprep.subr.mxu0 0.0
        %490 = vmatpush1.msra.mxu0 %v462
        %491 = vmatprep.subr.mxu0 0.0
        %492 = vmatpush1.msra.mxu0 %v463
        %493 = vmatprep.subr.mxu0 0.0
        %494 = vmatpush1.msra.mxu0 %v464
        %495 = vmatprep.subr.mxu0 0.0
        %496 = vmatpush1.msra.mxu0 %v465
        %497 = vmatprep.subr.mxu0 0.0
        %498 = vmatpush1.msra.mxu0 %v466
        %499 = vmatprep.subr.mxu0 0.0
        %500 = vmatpush1.msra.mxu0 %v467
        %501 = vmatprep.subr.mxu0 0.0
        %502 = vmatpush1.msra.mxu0 %v468
        %503 = vmatprep.subr.mxu0 0.0
        %504 = vmatpush1.msra.mxu0 %v469
        %505 = vmatprep.subr.mxu0 0.0
        %506 = vmatpush1.msra.mxu0 %v470
        %507 = vmatprep.subr.mxu0 0.0
        %508 = vmatpush1.msra.mxu0 %v471
        %509 = vmatprep.subr.mxu0 0.0
        %510 = vmatpush1.msra.mxu0 0.0
        %511 = vmatprep.subr.mxu0 0.0
        %512 = vmatpush1.msra.mxu0 0.0
        %513 = vmatprep.subr.mxu0 0.0
        %514 = vmatpush1.msra.mxu0 0.0
        %515 = vmatprep.subr.mxu0 0.0
        %516 = vmatpush1.msra.mxu0 0.0
        %517 = vmatprep.subr.mxu0 0.0
        %518 = vmatpush1.msra.mxu0 0.0
        %519 = vmatprep.subr.mxu0 0.0
        %520 = vmatpush1.msra.mxu0 0.0
        %521 = vmatprep.subr.mxu0 0.0
        %522 = vmatpush1.msra.mxu0 0.0
        %523 = vmatprep.subr.mxu0 0.0
        %524 = vmatpush1.msra.mxu0 0.0
        %525 = vmatprep.subr.mxu0 0.0
        %526 = vmatpush1.msra.mxu0 0.0
        %527 = vmatprep.subr.mxu0 0.0
        %528 = vmatpush1.msra.mxu0 0.0
        %529 = vmatprep.subr.mxu0 0.0
        %530 = vmatpush1.msra.mxu0 0.0
        %531 = vmatprep.subr.mxu0 0.0
        %532 = vmatpush1.msra.mxu0 0.0
        %533 = vmatprep.subr.mxu0 0.0
        %534 = vmatpush1.msra.mxu0 0.0
        %535 = vmatprep.subr.mxu0 0.0
        %536 = vmatpush1.msra.mxu0 0.0
        %537 = vmatprep.subr.mxu0 0.0
        %538 = vmatpush1.msra.mxu0 0.0
        %539 = vmatprep.subr.mxu0 0.0
        %540 = vmatpush1.msra.mxu0 0.0
        %541 = vmatprep.mubr.f32.mxu0 0.0
        %542 = vmatmul.mubr.f32.gmra.mrb[0].mxu0 %v454
        %v543 = vpop.f32.mrb[0].mxu0
        %v544 = vadd.f32 %v476, %v543
        %v545 = vpop.f32.mrb[0].mxu0
        %546 = vmatprep.mubr.f32.mxu0 0.0
        %547 = vmatmul.mubr.f32.gmra.mrb[0].mxu0 %v455
        %v548 = vpop.f32.mrb[0].mxu0
        %v549 = vadd.f32 %v476, %v548
        %v550 = vpop.f32.mrb[0].mxu0
        %551 = vdwg.mxu0
        %v552 = vld [vmem:[%s4 + $0x1] sm:$0x1]
        %v553 = vld [vmem:[%s4 + $0x2] sm:$0x1]
        %554 = vadd.xlane.f32.xlu0 %v544
        %v555 = vpop.xlane.xlu0 %554
        %556 = vadd.xlane.f32.xlu0 %v549
        %v557 = vpop.xlane.xlu0 %556
        %v558 = vmul.f32 %v555, 0.03125
        %v559 = vmul.f32 %v557, 0.03125
        %v560 = vmul.f32 %v544, %v544
        %v561 = vmul.f32 %v549, %v549
        %562 = vadd.xlane.f32.xlu0 %v560
        %v563 = vpop.xlane.xlu0 %562
        %564 = vadd.xlane.f32.xlu0 %v561
        %v565 = vpop.xlane.xlu0 %564
        %v566 = vmul.f32 %v563, 0.03125
        %v567 = vmul.f32 %v565, 0.03125
        %v568 = vmul.f32 %v558, %v558
        %v569 = vmul.f32 %v559, %v559
        %v570 = vsub.f32 %v566, %v568
        %v571 = vsub.f32 %v567, %v569
        %v572 = vadd.f32 %v570, 1e-05
        %v573 = vadd.f32 %v571, 1e-05
        %v574 = vrsqrt.pop %v572
        %v575 = vrsqrt.pop %v573
        %v576 = vlaneseq
        %v577 = vshrl.u32 %v576, 7
        %v578 = vsub.s32 0, %v577
        %v579 = vrot.slane %v552, %v578
        %v580 = vmul.f32 %v574, %v579
        %v581 = vmul.f32 %v575, %v579
        %v582 = vsub.f32 %v544, %v558
        %v583 = vsub.f32 %v549, %v559
        %v584 = vmul.f32 %v582, %v580
        %v585 = vmul.f32 %v583, %v581
        %v586 = vlaneseq
        %v587 = vshrl.u32 %v586, 7
        %v588 = vsub.s32 0, %v587
        %v589 = vrot.slane %v553, %v588
        %v590 = vadd.f32 %v584, %v589
        %v591 = vadd.f32 %v585, %v589
        %vm592 = vcmp.ge.f32.partialorder %v590, 0.0
        %vm593 = vcmp.ge.f32.partialorder %v591, 0.0
        %v594 = vmul.f32 %v590, 0.01
        %v595 = vmul.f32 %v591, 0.01
        %v596 = vsel %vm592, %v590, %v594
        %v597 = vsel %vm593, %v591, %v595
        %v598 = vld [vmem:[#allocation4] sm:$0xff]
        %v599 = vld [vmem:[#allocation4 + $0x8] sm:$0xff]
        %v600 = vld [vmem:[#allocation4 + $0x10] sm:$0xff]
        %v601 = vld [vmem:[#allocation4 + $0x18] sm:$0xff]
        %v602 = vld [vmem:[#allocation4 + $0x20] sm:$0xff]
        %v603 = vld [vmem:[#allocation4 + $0x28] sm:$0xff]
        %v604 = vld [vmem:[#allocation4 + $0x30] sm:$0xff]
        %v605 = vld [vmem:[#allocation4 + $0x38] sm:$0xff]
        %v606 = vld [vmem:[#allocation4 + $0x40] sm:$0xff]
        %v607 = vld [vmem:[#allocation4 + $0x48] sm:$0xff]
        %v608 = vld [vmem:[#allocation4 + $0x50] sm:$0xff]
        %v609 = vld [vmem:[#allocation4 + $0x58] sm:$0xff]
        %v610 = vld [vmem:[#allocation4 + $0x60] sm:$0xff]
        %v611 = vld [vmem:[#allocation4 + $0x68] sm:$0xff]
        %v612 = vld [vmem:[#allocation4 + $0x70] sm:$0xff]
        %v613 = vld [vmem:[#allocation4 + $0x78] sm:$0xff]
        %v614 = vld [vmem:[%s6] sm:$0x1]
        %v616 = vlaneseq
        %v617 = vshrl.u32 %v616, 7
        %v618 = vsub.s32 0, %v617
        %v619 = vrot.slane %v614, %v618
        %621 = vmatprep.subr.mxu0 0.0
        %622 = vmatpush1.msra.mxu0 %v598
        %623 = vmatprep.subr.mxu0 0.0
        %624 = vmatpush1.msra.mxu0 %v599
        %625 = vmatprep.subr.mxu0 0.0
        %626 = vmatpush1.msra.mxu0 %v600
        %627 = vmatprep.subr.mxu0 0.0
        %628 = vmatpush1.msra.mxu0 %v601
        %629 = vmatprep.subr.mxu0 0.0
        %630 = vmatpush1.msra.mxu0 %v602
        %631 = vmatprep.subr.mxu0 0.0
        %632 = vmatpush1.msra.mxu0 %v603
        %633 = vmatprep.subr.mxu0 0.0
        %634 = vmatpush1.msra.mxu0 %v604
        %635 = vmatprep.subr.mxu0 0.0
        %636 = vmatpush1.msra.mxu0 %v605
        %637 = vmatprep.subr.mxu0 0.0
        %638 = vmatpush1.msra.mxu0 %v606
        %639 = vmatprep.subr.mxu0 0.0
        %640 = vmatpush1.msra.mxu0 %v607
        %641 = vmatprep.subr.mxu0 0.0
        %642 = vmatpush1.msra.mxu0 %v608
        %643 = vmatprep.subr.mxu0 0.0
        %644 = vmatpush1.msra.mxu0 %v609
        %645 = vmatprep.subr.mxu0 0.0
        %646 = vmatpush1.msra.mxu0 %v610
        %647 = vmatprep.subr.mxu0 0.0
        %648 = vmatpush1.msra.mxu0 %v611
        %649 = vmatprep.subr.mxu0 0.0
        %650 = vmatpush1.msra.mxu0 %v612
        %651 = vmatprep.subr.mxu0 0.0
        %652 = vmatpush1.msra.mxu0 %v613
        %653 = vmatprep.subr.mxu0 0.0
        %654 = vmatpush1.msra.mxu0 0.0
        %655 = vmatprep.subr.mxu0 0.0
        %656 = vmatpush1.msra.mxu0 0.0
        %657 = vmatprep.subr.mxu0 0.0
        %658 = vmatpush1.msra.mxu0 0.0
        %659 = vmatprep.subr.mxu0 0.0
        %660 = vmatpush1.msra.mxu0 0.0
        %661 = vmatprep.subr.mxu0 0.0
        %662 = vmatpush1.msra.mxu0 0.0
        %663 = vmatprep.subr.mxu0 0.0
        %664 = vmatpush1.msra.mxu0 0.0
        %665 = vmatprep.subr.mxu0 0.0
        %666 = vmatpush1.msra.mxu0 0.0
        %667 = vmatprep.subr.mxu0 0.0
        %668 = vmatpush1.msra.mxu0 0.0
        %669 = vmatprep.subr.mxu0 0.0
        %670 = vmatpush1.msra.mxu0 0.0
        %671 = vmatprep.subr.mxu0 0.0
        %672 = vmatpush1.msra.mxu0 0.0
        %673 = vmatprep.subr.mxu0 0.0
        %674 = vmatpush1.msra.mxu0 0.0
        %675 = vmatprep.subr.mxu0 0.0
        %676 = vmatpush1.msra.mxu0 0.0
        %677 = vmatprep.subr.mxu0 0.0
        %678 = vmatpush1.msra.mxu0 0.0
        %679 = vmatprep.subr.mxu0 0.0
        %680 = vmatpush1.msra.mxu0 0.0
        %681 = vmatprep.subr.mxu0 0.0
        %682 = vmatpush1.msra.mxu0 0.0
        %683 = vmatprep.subr.mxu0 0.0
        %684 = vmatpush1.msra.mxu0 0.0
        %685 = vmatprep.mubr.f32.mxu0 0.0
        %686 = vmatmul.mubr.f32.gmra.mrb[0].mxu0 %v596
        %v687 = vpop.f32.mrb[0].mxu0
        %v688 = vadd.f32 %v619, %v687
        %v689 = vpop.f32.mrb[0].mxu0
        %690 = vmatprep.mubr.f32.mxu0 0.0
        %691 = vmatmul.mubr.f32.gmra.mrb[0].mxu0 %v597
        %v692 = vpop.f32.mrb[0].mxu0
        %v693 = vadd.f32 %v619, %v692
        %v694 = vpop.f32.mrb[0].mxu0
        %695 = vdwg.mxu0
        %v696 = vmul.f32 %v688, 0.5
        %v697 = vmul.f32 %v693, 0.5
        %v698 = vtanh.pop %v696
        %v699 = vtanh.pop %v697
        %v700 = vmul.f32 %v698, 0.5
        %v701 = vmul.f32 %v699, 0.5
        %v702 = vadd.f32 %v700, 0.5
        %v703 = vadd.f32 %v701, 0.5
        %704 = vst [vmem:[%s310] sm:$0xff] %v702
        %705 = vst [vmem:[%s310 + $0x8] sm:$0xff] %v703
        %s706 = smul.u32 2, %s20
        %p707 = scmp.lt.s32.totalorder %s706, 7
        %s708 = scalar_select %p707, %s706, 7
        %s709 = smul.addr %s708, 8
        %s710 = scalar_lea.vmem %s7, %s709
        // Predicated region
        $region57: #{actor_forward.1} parent=47 // pred_check
          %p711 = pneg %p190
        $region58: #{actor_forward.1} parent=47 // pred_check_branch
          %713 = sbr.rel (%p711) target = $region60
        $region59: #{actor_forward.1} parent=47 // pred_region
          %s714 = smul.u32 2, %s20
        $region60: #{actor_forward.1} parent=47 // pred_fallthru
          _
      $region48: #{actor_forward.1} parent=5 // pred_fallthru
        _
      %p715 = scmp.le.s32.totalorder 2, %s15
      // Predicated region
      $region61: #{actor_forward.1} parent=5 // pred_check
        %p716 = pneg %p715
      $region62: #{actor_forward.1} parent=5 // pred_check_branch
        %718 = sbr.rel (%p716) target = $region64
      $region63: #{actor_forward.1} parent=5 // pred_region
        %s719 = ssub.s32 %s15, 2
        // Predicated region
        $region65: #{actor_forward.1} parent=63 // pred_check
          %p720 = pneg %p196
        $region66: #{actor_forward.1} parent=63 // pred_check_branch
          %722 = sbr.rel (%p720) target = $region68
        $region67: #{actor_forward.1} parent=63 // pred_region
          %s723 = smul.u32 2, %s21
          %p724 = scmp.lt.s32.totalorder %s723, 7
          %s725 = scalar_select %p724, %s723, 7
          %s726 = smul.addr %s725, 8
          %s727 = scalar_lea.vmem %s7, %s726
        $region68: #{actor_forward.1} parent=63 // pred_fallthru
          _
      $region64: #{actor_forward.1} parent=5 // pred_fallthru
        _
    $region6: #{actor_forward.1} parent=1 // loop_footer
      %s19 = sadd.s32 1, %s15
    $region7: #{actor_forward.1} parent=1 // loop_footer_branch
      %14 = sbr.rel target = $region3
    $region8: #{actor_forward.1} parent=1 // loop_exit
      _
    %728 = vsyncpa [#allocation3], 1
    %s729 = scalar_lea.sflag [#allocation3], 1
    %730 = vsyncpa %s729, 1
    %731 = vsyncpa [#allocation5], 1

</llo_original>
